<compile_context>
chip_gen: v6e
topology: v6e:2x2x1
jax: 0.10.0
libtpu: 0.0.40
codegen_flags: <defaults>
</compile_context>

<pallas_src>
import functools

import jax
import jax.numpy as jnp
from jax.experimental import pallas as pl
from jax.experimental.pallas import tpu as pltpu


def dnn_kernel(x_ref,
               w1_ref, t1_ref,   # Linear(dim_in,512), input-BN + BN(512) scale folded in; shift
               w2_ref, t2_ref,   # Linear(512,256), BN(256) scale folded in; shift
               w3_ref, t3_ref,   # Linear(256,128), BN(128) scale folded in; shift
               w4_ref, b4_ref,   # Linear(128,1) as a (1,128) row + bias
               o_ref):           # (1, bm) lane-dense sigmoid output
    # bf16 activations / weights on the MXU, f32 accumulation, f32 epilogues.
    x = x_ref[...].astype(jnp.bfloat16)

    h = jnp.dot(x, w1_ref[...], preferred_element_type=jnp.float32)
    h = jnp.maximum(h + t1_ref[...], 0.0).astype(jnp.bfloat16)

    h = jnp.dot(h, w2_ref[...], preferred_element_type=jnp.float32)
    h = jnp.maximum(h + t2_ref[...], 0.0).astype(jnp.bfloat16)

    h = jnp.dot(h, w3_ref[...], preferred_element_type=jnp.float32)
    h = jnp.maximum(h + t3_ref[...], 0.0).astype(jnp.bfloat16)

    # Final Linear(128, 1) computed transposed on the MXU:
    #   (1, 128) @ (bm, 128)^T -> (1, bm)
    # so the result is already lane-dense for an unmasked store (no cross-lane
    # XLU reduce, no (bm, 1) masked vst.msk column store).
    logits = jax.lax.dot_general(
        w4_ref[...], h,
        dimension_numbers=(((1,), (1,)), ((), ())),
        preferred_element_type=jnp.float32)
    o_ref[...] = jax.nn.sigmoid(logits + b4_ref[...])


def _fold_bn(gamma, beta, mean, var, lin_bias=None, eps=1e-5):
    """Return (scale, shift) s.t. BN(z + lin_bias) == z * scale + shift."""
    scale = gamma / jnp.sqrt(var + eps)
    b = jnp.zeros_like(mean) if lin_bias is None else lin_bias
    shift = (b - mean) * scale + beta
    return scale, shift


@functools.partial(jax.jit, static_argnames=("bm",))
def dnn_forward(x, params, bm=1024):
    """bm: batch tile (sweep 512/1024/2048). Multiples of 256 suit the v6e/v7x
    256-wide MXU, multiples of 128 suit v5e; bm is clamped to round_up(B, 128)
    so small batches don't pay for padding. On v7x keep B/bm >= 2 so
    dimension_semantics=("parallel",) can use both TensorCores; bm >= 4096
    needs a raised vmem_limit_bytes on v5e/v6e and is not recommended on v7x
    (64 MiB physical VMEM)."""
    B, D = x.shape
    (bn0, (w1, b1), bn1, (w2, b2), bn2, (w3, b3), bn3, (w4, b4)) = params

    # ---- constant folding (all wrapper-side, f32) -------------------------
    # Input BN:  (x*s0 + t0) @ W1 + b1 == x @ (diag(s0) W1) + (t0 @ W1 + b1)
    s0, t0 = _fold_bn(*bn0)
    # Hidden BN scales are folded into the weight columns; shifts stay as
    # per-feature rows added in-kernel before the ReLU.
    s1, t1 = _fold_bn(*bn1, lin_bias=t0 @ w1 + b1)    # BN(512)
    s2, t2 = _fold_bn(*bn2, lin_bias=b2)              # BN(256)
    s3, t3 = _fold_bn(*bn3, lin_bias=b3)              # BN(128)

    w1k = ((s0[:, None] * w1) * s1[None, :]).astype(jnp.bfloat16)
    w2k = (w2 * s2[None, :]).astype(jnp.bfloat16)
    w3k = (w3 * s3[None, :]).astype(jnp.bfloat16)
    w4k = w4.reshape(1, -1).astype(jnp.bfloat16)       # (1, 128)
    b4k = b4.reshape(1, 1).astype(jnp.float32)

    row = lambda v: v.reshape(1, -1).astype(jnp.float32)
    t1, t2, t3 = row(t1), row(t2), row(t3)

    H1, H2, H3 = w1.shape[1], w2.shape[1], w3.shape[1]

    # ---- clamp tile to batch, pad batch to a multiple of the tile ----------
    bm_eff = max(128, min(bm, ((B + 127) // 128) * 128))
    n_blocks = pl.cdiv(B, bm_eff)
    Bp = n_blocks * bm_eff
    if Bp != B:
        x = jnp.pad(x, ((0, Bp - B), (0, 0)))

    full = lambda shp: pl.BlockSpec(shp, lambda i, _s=shp: tuple(0 for _ in _s))

    in_specs = [
        pl.BlockSpec((bm_eff, D), lambda i: (i, 0)),   # x tiled along batch
        full((D, H1)), full((1, H1)),                  # w1, t1
        full((H1, H2)), full((1, H2)),                 # w2, t2
        full((H2, H3)), full((1, H3)),                 # w3, t3
        full((1, H3)), full((1, 1)),                   # w4 row, b4
    ]
    # Lane-dense output: one (1, bm) row per batch tile.
    out_specs = pl.BlockSpec((1, bm_eff), lambda i: (i, 0))

    out = pl.pallas_call(
        dnn_kernel,
        out_shape=jax.ShapeDtypeStruct((n_blocks, bm_eff), jnp.float32),
        grid_spec=pltpu.PrefetchScalarGridSpec(
            num_scalar_prefetch=0,
            grid=(n_blocks,),
            in_specs=in_specs,
            out_specs=out_specs,
        ),
        compiler_params=pltpu.CompilerParams(
            dimension_semantics=("parallel",)),
    )(x, w1k, t1, w2k, t2, w3k, t3, w4k, b4k)

    # (n_blocks, bm) row-major == original batch order; slice off padding.
    return out.reshape(-1, 1)[:B]


def init_params(key, dim_in):
    dims = [dim_in, 512, 256, 128, 1]

    def bn(key, n):
        k1, k2, k3, k4 = jax.random.split(key, 4)
        gamma = 1.0 + 0.1 * jax.random.normal(k1, (n,), jnp.float32)
        beta = 0.1 * jax.random.normal(k2, (n,), jnp.float32)
        mean = 0.1 * jax.random.normal(k3, (n,), jnp.float32)
        var = jax.random.uniform(k4, (n,), jnp.float32, 0.5, 1.5)
        return (gamma, beta, mean, var)

    def linear(key, n_in, n_out):
        k1, k2 = jax.random.split(key)
        bound = 1.0 / jnp.sqrt(n_in)
        w = jax.random.uniform(k1, (n_in, n_out), jnp.float32, -bound, bound)
        b = jax.random.uniform(k2, (n_out,), jnp.float32, -bound, bound)
        return (w, b)

    keys = jax.random.split(key, 8)
    return (
        bn(keys[0], dims[0]),
        linear(keys[1], dims[0], dims[1]), bn(keys[2], dims[1]),
        linear(keys[3], dims[1], dims[2]), bn(keys[4], dims[2]),
        linear(keys[5], dims[2], dims[3]), bn(keys[6], dims[3]),
        linear(keys[7], dims[3], dims[4]),
    )


def dnn_reference(x, params, eps=1e-5):
    (bn0, (w1, b1), bn1, (w2, b2), bn2, (w3, b3), bn3, (w4, b4)) = params

    def bn_apply(z, p):
        gamma, beta, mean, var = p
        return (z - mean) / jnp.sqrt(var + eps) * gamma + beta

    h = bn_apply(x, bn0)
    h = jnp.maximum(bn_apply(h @ w1 + b1, bn1), 0.0)
    h = jnp.maximum(bn_apply(h @ w2 + b2, bn2), 0.0)
    h = jnp.maximum(bn_apply(h @ w3 + b3, bn3), 0.0)
    return jax.nn.sigmoid(h @ w4 + b4)


if __name__ == "__main__":
    key = jax.random.PRNGKey(0)
    k_x, k_p = jax.random.split(key)

    batch, dim_in = 16, 32
    x = jax.random.normal(k_x, (batch, dim_in), jnp.float32)
    params = init_params(k_p, dim_in)

    out = dnn_forward(x, params)   # bm clamps to 128 for this tiny batch
    out = jax.block_until_ready(out)

    ref = dnn_reference(x, params)
    assert out.shape == (batch, 1)
    # bf16 matmul inputs with f32 accumulation -> looser tolerance vs f32 ref.
    assert jnp.allclose(out, ref, atol=5e-2, rtol=0.0), "mismatch vs reference"

    print("KERNEL_OK")
</pallas_src>

<mosaic_0001>
module attributes {stable_mosaic.version = 11 : i64} {
  func.func @dnn_kernel(%arg0: i32, %arg1: memref<128x32xf32, #tpu.memory_space<vmem>>, %arg2: memref<32x512xbf16, #tpu.memory_space<vmem>>, %arg3: memref<1x512xf32, #tpu.memory_space<vmem>>, %arg4: memref<512x256xbf16, #tpu.memory_space<vmem>>, %arg5: memref<1x256xf32, #tpu.memory_space<vmem>>, %arg6: memref<256x128xbf16, #tpu.memory_space<vmem>>, %arg7: memref<1x128xf32, #tpu.memory_space<vmem>>, %arg8: memref<1x128xbf16, #tpu.memory_space<vmem>>, %arg9: memref<1x1xf32, #tpu.memory_space<vmem>>, %arg10: memref<1x128xf32, #tpu.memory_space<vmem>>) attributes {dimension_semantics = [#tpu.dimension_semantics<parallel>], iteration_bounds = array<i64: 1>, scalar_prefetch = 0 : i64, scratch_operands = 0 : i64, tpu.core_type = #tpu.core_type<tc>, window_params = [{transform_indices = @transform_0, window_bounds = array<i64: 128, 32>}, {pipeline_mode = #tpu.pipeline_mode<synchronous>, transform_indices = @transform_1, window_bounds = array<i64: 32, 512>}, {pipeline_mode = #tpu.pipeline_mode<synchronous>, transform_indices = @transform_2, window_bounds = array<i64: 1, 512>}, {pipeline_mode = #tpu.pipeline_mode<synchronous>, transform_indices = @transform_3, window_bounds = array<i64: 512, 256>}, {pipeline_mode = #tpu.pipeline_mode<synchronous>, transform_indices = @transform_4, window_bounds = array<i64: 1, 256>}, {pipeline_mode = #tpu.pipeline_mode<synchronous>, transform_indices = @transform_5, window_bounds = array<i64: 256, 128>}, {pipeline_mode = #tpu.pipeline_mode<synchronous>, transform_indices = @transform_6, window_bounds = array<i64: 1, 128>}, {pipeline_mode = #tpu.pipeline_mode<synchronous>, transform_indices = @transform_7, window_bounds = array<i64: 1, 128>}, {pipeline_mode = #tpu.pipeline_mode<synchronous>, transform_indices = @transform_8, window_bounds = array<i64: 1, 1>}, {transform_indices = @transform_9, window_bounds = array<i64: 1, 128>}]} {
    %c0 = arith.constant 0 : index
    %c0_0 = arith.constant 0 : index
    %0 = vector.load %arg1[%c0, %c0_0] : memref<128x32xf32, #tpu.memory_space<vmem>>, vector<128x32xf32>
    %1 = arith.truncf %0 : vector<128x32xf32> to vector<128x32xbf16>
    %c0_1 = arith.constant 0 : index
    %c0_2 = arith.constant 0 : index
    %2 = vector.load %arg2[%c0_1, %c0_2] : memref<32x512xbf16, #tpu.memory_space<vmem>>, vector<32x512xbf16>
    %cst = arith.constant dense<0.000000e+00> : vector<128x512xf32>
    %3 = tpu.matmul %1, %2, %cst {dimension_numbers = #tpu.dot_dimension_numbers<[1], [0], [0], [1], [0, 0, 1, 1], [], []>} : vector<128x32xbf16>, vector<32x512xbf16>, vector<128x512xf32> -> vector<128x512xf32>
    %c0_3 = arith.constant 0 : index
    %c0_4 = arith.constant 0 : index
    %4 = vector.load %arg3[%c0_3, %c0_4] : memref<1x512xf32, #tpu.memory_space<vmem>>, vector<1x512xf32>
    %5 = vector.broadcast %4 : vector<1x512xf32> to vector<128x512xf32>
    %6 = arith.addf %3, %5 : vector<128x512xf32>
    %cst_5 = arith.constant 0.000000e+00 : f32
    %7 = vector.broadcast %cst_5 : f32 to vector<128x512xf32>
    %8 = arith.maximumf %6, %7 : vector<128x512xf32>
    %9 = arith.truncf %8 : vector<128x512xf32> to vector<128x512xbf16>
    %c0_6 = arith.constant 0 : index
    %c0_7 = arith.constant 0 : index
    %10 = vector.load %arg4[%c0_6, %c0_7] : memref<512x256xbf16, #tpu.memory_space<vmem>>, vector<512x256xbf16>
    %cst_8 = arith.constant dense<0.000000e+00> : vector<128x256xf32>
    %11 = tpu.matmul %9, %10, %cst_8 {dimension_numbers = #tpu.dot_dimension_numbers<[1], [0], [0], [1], [0, 0, 1, 1], [], []>} : vector<128x512xbf16>, vector<512x256xbf16>, vector<128x256xf32> -> vector<128x256xf32>
    %c0_9 = arith.constant 0 : index
    %c0_10 = arith.constant 0 : index
    %12 = vector.load %arg5[%c0_9, %c0_10] : memref<1x256xf32, #tpu.memory_space<vmem>>, vector<1x256xf32>
    %13 = vector.broadcast %12 : vector<1x256xf32> to vector<128x256xf32>
    %14 = arith.addf %11, %13 : vector<128x256xf32>
    %cst_11 = arith.constant 0.000000e+00 : f32
    %15 = vector.broadcast %cst_11 : f32 to vector<128x256xf32>
    %16 = arith.maximumf %14, %15 : vector<128x256xf32>
    %17 = arith.truncf %16 : vector<128x256xf32> to vector<128x256xbf16>
    %c0_12 = arith.constant 0 : index
    %c0_13 = arith.constant 0 : index
    %18 = vector.load %arg6[%c0_12, %c0_13] : memref<256x128xbf16, #tpu.memory_space<vmem>>, vector<256x128xbf16>
    %cst_14 = arith.constant dense<0.000000e+00> : vector<128x128xf32>
    %19 = tpu.matmul %17, %18, %cst_14 {dimension_numbers = #tpu.dot_dimension_numbers<[1], [0], [0], [1], [0, 0, 1, 1], [], []>} : vector<128x256xbf16>, vector<256x128xbf16>, vector<128x128xf32> -> vector<128x128xf32>
    %c0_15 = arith.constant 0 : index
    %c0_16 = arith.constant 0 : index
    %20 = vector.load %arg7[%c0_15, %c0_16] : memref<1x128xf32, #tpu.memory_space<vmem>>, vector<1x128xf32>
    %21 = vector.broadcast %20 : vector<1x128xf32> to vector<128x128xf32>
    %22 = arith.addf %19, %21 : vector<128x128xf32>
    %cst_17 = arith.constant 0.000000e+00 : f32
    %23 = vector.broadcast %cst_17 : f32 to vector<128x128xf32>
    %24 = arith.maximumf %22, %23 : vector<128x128xf32>
    %25 = arith.truncf %24 : vector<128x128xf32> to vector<128x128xbf16>
    %c0_18 = arith.constant 0 : index
    %c0_19 = arith.constant 0 : index
    %26 = vector.load %arg8[%c0_18, %c0_19] : memref<1x128xbf16, #tpu.memory_space<vmem>>, vector<1x128xbf16>
    %cst_20 = arith.constant dense<0.000000e+00> : vector<1x128xf32>
    %27 = tpu.matmul %26, %25, %cst_20 {dimension_numbers = #tpu.dot_dimension_numbers<[1], [1], [0], [0], [0, 0, 1, 0], [], []>} : vector<1x128xbf16>, vector<128x128xbf16>, vector<1x128xf32> -> vector<1x128xf32>
    %c0_21 = arith.constant 0 : index
    %c0_22 = arith.constant 0 : index
    %28 = vector.load %arg9[%c0_21, %c0_22] : memref<1x1xf32, #tpu.memory_space<vmem>>, vector<1x1xf32>
    %29 = vector.broadcast %28 : vector<1x1xf32> to vector<1x128xf32>
    %30 = arith.addf %27, %29 : vector<1x128xf32>
    %31 = arith.negf %30 : vector<1x128xf32>
    %32 = math.exp %31 : vector<1x128xf32>
    %cst_23 = arith.constant 1.000000e+00 : f32
    %33 = vector.broadcast %cst_23 : f32 to vector<1x128xf32>
    %34 = arith.addf %33, %32 : vector<1x128xf32>
    %35 = arith.divf %33, %34 : vector<1x128xf32>
    %c0_24 = arith.constant 0 : index
    %c0_25 = arith.constant 0 : index
    %36 = vector.load %arg10[%c0_24, %c0_25] : memref<1x128xf32, #tpu.memory_space<vmem>>, vector<1x128xf32>
    tpu.vector_store %arg10[%c0_24, %c0_25], %35 {strides = array<i32>} : memref<1x128xf32, #tpu.memory_space<vmem>>, vector<1x128xf32>,
    return
  }
  func.func @transform_0(%arg0: i32) -> (i32, i32) {
    %c0_i32 = arith.constant 0 : i32
    %c0_i32_0 = arith.constant 0 : i32
    return %arg0, %c0_i32 : i32, i32
  }
  func.func @transform_1(%arg0: i32) -> (i32, i32) {
    %c0_i32 = arith.constant 0 : i32
    %c0_i32_0 = arith.constant 0 : i32
    %c0_i32_1 = arith.constant 0 : i32
    return %c0_i32, %c0_i32_0 : i32, i32
  }
  func.func @transform_2(%arg0: i32) -> (i32, i32) {
    %c0_i32 = arith.constant 0 : i32
    %c0_i32_0 = arith.constant 0 : i32
    %c0_i32_1 = arith.constant 0 : i32
    return %c0_i32, %c0_i32_0 : i32, i32
  }
  func.func @transform_3(%arg0: i32) -> (i32, i32) {
    %c0_i32 = arith.constant 0 : i32
    %c0_i32_0 = arith.constant 0 : i32
    %c0_i32_1 = arith.constant 0 : i32
    return %c0_i32, %c0_i32_0 : i32, i32
  }
  func.func @transform_4(%arg0: i32) -> (i32, i32) {
    %c0_i32 = arith.constant 0 : i32
    %c0_i32_0 = arith.constant 0 : i32
    %c0_i32_1 = arith.constant 0 : i32
    return %c0_i32, %c0_i32_0 : i32, i32
  }
  func.func @transform_5(%arg0: i32) -> (i32, i32) {
    %c0_i32 = arith.constant 0 : i32
    %c0_i32_0 = arith.constant 0 : i32
    %c0_i32_1 = arith.constant 0 : i32
    return %c0_i32, %c0_i32_0 : i32, i32
  }
  func.func @transform_6(%arg0: i32) -> (i32, i32) {
    %c0_i32 = arith.constant 0 : i32
    %c0_i32_0 = arith.constant 0 : i32
    %c0_i32_1 = arith.constant 0 : i32
    return %c0_i32, %c0_i32_0 : i32, i32
  }
  func.func @transform_7(%arg0: i32) -> (i32, i32) {
    %c0_i32 = arith.constant 0 : i32
    %c0_i32_0 = arith.constant 0 : i32
    %c0_i32_1 = arith.constant 0 : i32
    return %c0_i32, %c0_i32_0 : i32, i32
  }
  func.func @transform_8(%arg0: i32) -> (i32, i32) {
    %c0_i32 = arith.constant 0 : i32
    %c0_i32_0 = arith.constant 0 : i32
    %c0_i32_1 = arith.constant 0 : i32
    return %c0_i32, %c0_i32_0 : i32, i32
  }
  func.func @transform_9(%arg0: i32) -> (i32, i32) {
    %c0_i32 = arith.constant 0 : i32
    %c0_i32_0 = arith.constant 0 : i32
    return %arg0, %c0_i32 : i32, i32
  }
}

</mosaic_0001>

<llo_original>
// kernel: dnn_forward.1
$region0: #{dnn_forward.1}
  #allocation0 [shape = 'u32[]', space=smem, size = 0x4, offset = 0x4, fixed_abs, tag = 'smem constant byte address 0x4 - core index']
  #allocation1 [shape = 'u32[144,128]{1,0:T(1,128)}', space=vmem, size = 0x12000, scoped, tag = 'internal scratch']
  #allocation2 [shape = 'f32[1,1]{1,0:T(1,128)S(1)}', space=vmem, size = 0x200, scoped, tag = 'scoped memory for dnn_forward.1']
  %s0 = inlined_call_operand.vmem [shape: f32[128,32], index: 0, kind: input, shape index: {}]
  %s1 = inlined_call_operand.vmem [shape: bf16[32,512], index: 1, kind: input, shape index: {}]
  %s2 = inlined_call_operand.vmem [shape: f32[1,512], index: 2, kind: input, shape index: {}]
  %s3 = inlined_call_operand.vmem [shape: bf16[512,256], index: 3, kind: input, shape index: {}]
  %s4 = inlined_call_operand.vmem [shape: f32[1,256], index: 4, kind: input, shape index: {}]
  %s5 = inlined_call_operand.vmem [shape: bf16[256,128], index: 5, kind: input, shape index: {}]
  %s6 = inlined_call_operand.vmem [shape: f32[1,128], index: 6, kind: input, shape index: {}]
  %s7 = inlined_call_operand.vmem [shape: bf16[1,128], index: 7, kind: input, shape index: {}]
  %s8 = inlined_call_operand.<no memory space> [shape: f32[1,1], index: 8, kind: input, shape index: {}]
  %s9 = inlined_call_operand.vmem [shape: f32[1,128], index: 9, kind: output, shape index: {}]
  %s10 = sld [smem:[#allocation0]]
  $region46: #{dnn_forward.1} parent=0
    _
  %s12 = ssub.s32 1, %s10
  %s13 = scalar_select 0, %s12, %s10
  %v14 = vstv %s8
  %15 = vst [vmem:[#allocation2] sm:$0x1] %v14
  // Predicated region
  $region2: #{dnn_forward.1} parent=0 // pred_check
    _
  $region3: #{dnn_forward.1} parent=0 // pred_check_branch
    %17 = sbr.rel (0) target = $region5
  $region4: #{dnn_forward.1} parent=0 // pred_region
    _
  $region5: #{dnn_forward.1} parent=0 // pred_fallthru
    _
  // Predicated region
  $region6: #{dnn_forward.1} parent=0 // pred_check
    _
  $region7: #{dnn_forward.1} parent=0 // pred_check_branch
    %19 = sbr.rel (0) target = $region9
  $region8: #{dnn_forward.1} parent=0 // pred_region
    _
  $region9: #{dnn_forward.1} parent=0 // pred_fallthru
    _
  // Predicated region
  $region10: #{dnn_forward.1} parent=0 // pred_check
    _
  $region11: #{dnn_forward.1} parent=0 // pred_check_branch
    %21 = sbr.rel (0) target = $region13
  $region12: #{dnn_forward.1} parent=0 // pred_region
    _
  $region13: #{dnn_forward.1} parent=0 // pred_fallthru
    _
  // Predicated region
  $region14: #{dnn_forward.1} parent=0 // pred_check
    _
  $region15: #{dnn_forward.1} parent=0 // pred_check_branch
    %23 = sbr.rel (0) target = $region17
  $region16: #{dnn_forward.1} parent=0 // pred_region
    _
  $region17: #{dnn_forward.1} parent=0 // pred_fallthru
    _
  // Predicated region
  $region18: #{dnn_forward.1} parent=0 // pred_check
    _
  $region19: #{dnn_forward.1} parent=0 // pred_check_branch
    %25 = sbr.rel (0) target = $region21
  $region20: #{dnn_forward.1} parent=0 // pred_region
    _
  $region21: #{dnn_forward.1} parent=0 // pred_fallthru
    _
  // Predicated region
  $region22: #{dnn_forward.1} parent=0 // pred_check
    _
  $region23: #{dnn_forward.1} parent=0 // pred_check_branch
    %27 = sbr.rel (0) target = $region25
  $region24: #{dnn_forward.1} parent=0 // pred_region
    _
  $region25: #{dnn_forward.1} parent=0 // pred_fallthru
    _
  // Predicated region
  $region26: #{dnn_forward.1} parent=0 // pred_check
    _
  $region27: #{dnn_forward.1} parent=0 // pred_check_branch
    %29 = sbr.rel (0) target = $region29
  $region28: #{dnn_forward.1} parent=0 // pred_region
    _
  $region29: #{dnn_forward.1} parent=0 // pred_fallthru
    _
  // Predicated region
  $region30: #{dnn_forward.1} parent=0 // pred_check
    _
  $region31: #{dnn_forward.1} parent=0 // pred_check_branch
    %31 = sbr.rel (0) target = $region33
  $region32: #{dnn_forward.1} parent=0 // pred_region
    _
  $region33: #{dnn_forward.1} parent=0 // pred_fallthru
    _
  // Predicated region
  $region34: #{dnn_forward.1} parent=0 // pred_check
    _
  $region35: #{dnn_forward.1} parent=0 // pred_check_branch
    %33 = sbr.rel (0) target = $region37
  $region36: #{dnn_forward.1} parent=0 // pred_region
    _
  $region37: #{dnn_forward.1} parent=0 // pred_fallthru
    _
  %v35 = vld [vmem:[%s0] sm:$0xff]
  %v36 = vld [vmem:[%s0 + $0x8] sm:$0xff]
  %v37 = vld [vmem:[%s0 + $0x10] sm:$0xff]
  %v38 = vld [vmem:[%s0 + $0x18] sm:$0xff]
  %v39 = vld [vmem:[%s0 + $0x20] sm:$0xff]
  %v40 = vld [vmem:[%s0 + $0x28] sm:$0xff]
  %v41 = vld [vmem:[%s0 + $0x30] sm:$0xff]
  %v42 = vld [vmem:[%s0 + $0x38] sm:$0xff]
  %v43 = vld [vmem:[%s0 + $0x40] sm:$0xff]
  %v44 = vld [vmem:[%s0 + $0x48] sm:$0xff]
  %v45 = vld [vmem:[%s0 + $0x50] sm:$0xff]
  %v46 = vld [vmem:[%s0 + $0x58] sm:$0xff]
  %v47 = vld [vmem:[%s0 + $0x60] sm:$0xff]
  %v48 = vld [vmem:[%s0 + $0x68] sm:$0xff]
  %v49 = vld [vmem:[%s0 + $0x70] sm:$0xff]
  %v50 = vld [vmem:[%s0 + $0x78] sm:$0xff]
  %v51 = vpack.c.bf16 %v36, %v35
  %v52 = vpack.c.bf16 %v38, %v37
  %v53 = vpack.c.bf16 %v40, %v39
  %v54 = vpack.c.bf16 %v42, %v41
  %v55 = vpack.c.bf16 %v44, %v43
  %v56 = vpack.c.bf16 %v46, %v45
  %v57 = vpack.c.bf16 %v48, %v47
  %v58 = vpack.c.bf16 %v50, %v49
  %v59 = vld [vmem:[%s1] sm:$0xff]
  %v60 = vld [vmem:[%s1 + $0x8] sm:$0xff]
  %v61 = vld [vmem:[%s1 + $0x10] sm:$0xff]
  %v62 = vld [vmem:[%s1 + $0x18] sm:$0xff]
  %v63 = vld [vmem:[%s1 + $0x20] sm:$0xff]
  %v64 = vld [vmem:[%s1 + $0x28] sm:$0xff]
  %v65 = vld [vmem:[%s1 + $0x30] sm:$0xff]
  %v66 = vld [vmem:[%s1 + $0x38] sm:$0xff]
  %v67 = vld [vmem:[%s2] sm:$0xf]
  %v69 = vlaneseq
  %v70 = vshrl.u32 %v69, 7
  %v71 = vsub.s32 0, %v70
  %v72 = vrot.slane %v67, %v71
  %v73 = vlaneseq
  %v74 = vshrl.u32 %v73, 7
  %v75 = vsub.s32 1, %v74
  %v76 = vrot.slane %v67, %v75
  %v77 = vlaneseq
  %v78 = vshrl.u32 %v77, 7
  %v79 = vsub.s32 2, %v78
  %v80 = vrot.slane %v67, %v79
  %v81 = vlaneseq
  %v82 = vshrl.u32 %v81, 7
  %v83 = vsub.s32 3, %v82
  %v84 = vrot.slane %v67, %v83
  %v97 = vunpack.c.l.b16 %v59
  %v98 = vunpack.c.h.b16 %v59
  %v99 = vunpack.c.l.b16 %v60
  %v100 = vunpack.c.h.b16 %v60
  %v101 = vunpack.c.l.b16 %v61
  %v102 = vunpack.c.h.b16 %v61
  %v103 = vunpack.c.l.b16 %v62
  %v104 = vunpack.c.h.b16 %v62
  %v105 = vunpack.c.l.b16 %v63
  %v106 = vunpack.c.h.b16 %v63
  %v107 = vunpack.c.l.b16 %v64
  %v108 = vunpack.c.h.b16 %v64
  %v109 = vunpack.c.l.b16 %v65
  %v110 = vunpack.c.h.b16 %v65
  %v111 = vunpack.c.l.b16 %v66
  %v112 = vunpack.c.h.b16 %v66
  %v113 = vpack.c.b16 %v101, %v97
  %v114 = vpack.c.b16 %v102, %v98
  %v115 = vpack.c.b16 %v103, %v99
  %v116 = vpack.c.b16 %v104, %v100
  %v117 = vpack.c.b16 %v109, %v105
  %v118 = vpack.c.b16 %v110, %v106
  %v119 = vpack.c.b16 %v111, %v107
  %v120 = vpack.c.b16 %v112, %v108
  %vm129 = vcmask 261120
  %v131 = vsel %vm129, %v51, 0
  %v134 = vsel %vm129, %v52, 0
  %v137 = vsel %vm129, %v53, 0
  %v140 = vsel %vm129, %v54, 0
  %v143 = vsel %vm129, %v55, 0
  %v146 = vsel %vm129, %v56, 0
  %v149 = vsel %vm129, %v57, 0
  %v152 = vsel %vm129, %v58, 0
  %154 = vmatprep.subr.bf16.mxu0 0
  %155 = vmatpush1.bf16.msra.mxu0 0
  %156 = vmatprep.subr.bf16.mxu0 0
  %157 = vmatpush1.bf16.msra.mxu0 0
  %158 = vmatprep.subr.bf16.mxu0 0
  %159 = vmatpush1.bf16.msra.mxu0 0
  %160 = vmatprep.subr.bf16.mxu0 0
  %161 = vmatpush1.bf16.msra.mxu0 0
  %162 = vmatprep.subr.bf16.mxu0 0
  %163 = vmatpush1.bf16.msra.mxu0 0
  %164 = vmatprep.subr.bf16.mxu0 0
  %165 = vmatpush1.bf16.msra.mxu0 0
  %166 = vmatprep.subr.bf16.mxu0 %v118
  %167 = vmatpush1.bf16.msra.mxu0 %v117
  %168 = vmatprep.subr.bf16.mxu0 %v114
  %169 = vmatpush1.bf16.msra.mxu0 %v113
  %170 = vmatprep.subr.bf16.mxu0 0
  %171 = vmatpush2.bf16.msra.mxu0 0
  %172 = vmatprep.subr.bf16.mxu0 0
  %173 = vmatpush2.bf16.msra.mxu0 0
  %174 = vmatprep.subr.bf16.mxu0 0
  %175 = vmatpush2.bf16.msra.mxu0 0
  %176 = vmatprep.subr.bf16.mxu0 0
  %177 = vmatpush2.bf16.msra.mxu0 0
  %178 = vmatprep.subr.bf16.mxu0 0
  %179 = vmatpush2.bf16.msra.mxu0 0
  %180 = vmatprep.subr.bf16.mxu0 0
  %181 = vmatpush2.bf16.msra.mxu0 0
  %182 = vmatprep.subr.bf16.mxu0 0
  %183 = vmatpush2.bf16.msra.mxu0 0
  %184 = vmatprep.subr.bf16.mxu0 0
  %185 = vmatpush2.bf16.msra.mxu0 0
  %186 = vmatprep.mubr.bf16.mxu0 0
  %187 = vmatmul.mubr.bf16.gmra.mxu0 %v131
  %v188 = vpop.f32.mrf.mxu0
  %v189 = vadd.f32 %v72, %v188
  %v190 = vpop.f32.mrf.mxu0
  %v191 = vadd.f32 %v76, %v190
  %v192 = vpop.f32.mrf.mxu0
  %v193 = vadd.f32 %v72, %v192
  %v194 = vpop.f32.mrf.mxu0
  %v195 = vadd.f32 %v76, %v194
  %196 = vmatprep.mubr.bf16.mxu0 0
  %197 = vmatmul.mubr.bf16.gmra.mxu0 %v134
  %v198 = vpop.f32.mrf.mxu0
  %v199 = vadd.f32 %v72, %v198
  %v200 = vpop.f32.mrf.mxu0
  %v201 = vadd.f32 %v76, %v200
  %v202 = vpop.f32.mrf.mxu0
  %v203 = vadd.f32 %v72, %v202
  %v204 = vpop.f32.mrf.mxu0
  %v205 = vadd.f32 %v76, %v204
  %206 = vmatprep.mubr.bf16.mxu0 0
  %207 = vmatmul.mubr.bf16.gmra.mxu0 %v137
  %v208 = vpop.f32.mrf.mxu0
  %v209 = vadd.f32 %v72, %v208
  %v210 = vpop.f32.mrf.mxu0
  %v211 = vadd.f32 %v76, %v210
  %v212 = vpop.f32.mrf.mxu0
  %v213 = vadd.f32 %v72, %v212
  %v214 = vpop.f32.mrf.mxu0
  %v215 = vadd.f32 %v76, %v214
  %216 = vmatprep.mubr.bf16.mxu0 0
  %217 = vmatmul.mubr.bf16.gmra.mxu0 %v140
  %v218 = vpop.f32.mrf.mxu0
  %v219 = vadd.f32 %v72, %v218
  %v220 = vpop.f32.mrf.mxu0
  %v221 = vadd.f32 %v76, %v220
  %v222 = vpop.f32.mrf.mxu0
  %v223 = vadd.f32 %v72, %v222
  %v224 = vpop.f32.mrf.mxu0
  %v225 = vadd.f32 %v76, %v224
  %226 = vmatprep.mubr.bf16.mxu0 0
  %227 = vmatmul.mubr.bf16.gmra.mxu0 %v143
  %v228 = vpop.f32.mrf.mxu0
  %v229 = vadd.f32 %v72, %v228
  %v230 = vpop.f32.mrf.mxu0
  %v231 = vadd.f32 %v76, %v230
  %v232 = vpop.f32.mrf.mxu0
  %v233 = vadd.f32 %v72, %v232
  %v234 = vpop.f32.mrf.mxu0
  %v235 = vadd.f32 %v76, %v234
  %236 = vmatprep.mubr.bf16.mxu0 0
  %237 = vmatmul.mubr.bf16.gmra.mxu0 %v146
  %v238 = vpop.f32.mrf.mxu0
  %v239 = vadd.f32 %v72, %v238
  %v240 = vpop.f32.mrf.mxu0
  %v241 = vadd.f32 %v76, %v240
  %v242 = vpop.f32.mrf.mxu0
  %v243 = vadd.f32 %v72, %v242
  %v244 = vpop.f32.mrf.mxu0
  %v245 = vadd.f32 %v76, %v244
  %246 = vmatprep.mubr.bf16.mxu0 0
  %247 = vmatmul.mubr.bf16.gmra.mxu0 %v149
  %v248 = vpop.f32.mrf.mxu0
  %v249 = vadd.f32 %v72, %v248
  %v250 = vpop.f32.mrf.mxu0
  %v251 = vadd.f32 %v76, %v250
  %v252 = vpop.f32.mrf.mxu0
  %v253 = vadd.f32 %v72, %v252
  %v254 = vpop.f32.mrf.mxu0
  %v255 = vadd.f32 %v76, %v254
  %256 = vmatprep.mubr.bf16.mxu0 0
  %257 = vmatmul.mubr.bf16.gmra.mxu0 %v152
  %v258 = vpop.f32.mrf.mxu0
  %v259 = vadd.f32 %v72, %v258
  %v260 = vpop.f32.mrf.mxu0
  %v261 = vadd.f32 %v76, %v260
  %v262 = vpop.f32.mrf.mxu0
  %v263 = vadd.f32 %v72, %v262
  %v264 = vpop.f32.mrf.mxu0
  %v265 = vadd.f32 %v76, %v264
  %266 = vdwg.mxu0
  %267 = vmatprep.subr.bf16.mxu0 0
  %268 = vmatpush1.bf16.msra.mxu0 0
  %269 = vmatprep.subr.bf16.mxu0 0
  %270 = vmatpush1.bf16.msra.mxu0 0
  %271 = vmatprep.subr.bf16.mxu0 0
  %272 = vmatpush1.bf16.msra.mxu0 0
  %273 = vmatprep.subr.bf16.mxu0 0
  %274 = vmatpush1.bf16.msra.mxu0 0
  %275 = vmatprep.subr.bf16.mxu0 0
  %276 = vmatpush1.bf16.msra.mxu0 0
  %277 = vmatprep.subr.bf16.mxu0 0
  %278 = vmatpush1.bf16.msra.mxu0 0
  %279 = vmatprep.subr.bf16.mxu0 %v120
  %280 = vmatpush1.bf16.msra.mxu0 %v119
  %281 = vmatprep.subr.bf16.mxu0 %v116
  %282 = vmatpush1.bf16.msra.mxu0 %v115
  %283 = vmatprep.subr.bf16.mxu0 0
  %284 = vmatpush2.bf16.msra.mxu0 0
  %285 = vmatprep.subr.bf16.mxu0 0
  %286 = vmatpush2.bf16.msra.mxu0 0
  %287 = vmatprep.subr.bf16.mxu0 0
  %288 = vmatpush2.bf16.msra.mxu0 0
  %289 = vmatprep.subr.bf16.mxu0 0
  %290 = vmatpush2.bf16.msra.mxu0 0
  %291 = vmatprep.subr.bf16.mxu0 0
  %292 = vmatpush2.bf16.msra.mxu0 0
  %293 = vmatprep.subr.bf16.mxu0 0
  %294 = vmatpush2.bf16.msra.mxu0 0
  %295 = vmatprep.subr.bf16.mxu0 0
  %296 = vmatpush2.bf16.msra.mxu0 0
  %297 = vmatprep.subr.bf16.mxu0 0
  %298 = vmatpush2.bf16.msra.mxu0 0
  %299 = vmatprep.mubr.bf16.mxu0 0
  %300 = vmatmul.mubr.bf16.gmra.mxu0 %v131
  %v301 = vpop.f32.mrf.mxu0
  %v302 = vadd.f32 %v80, %v301
  %v303 = vpop.f32.mrf.mxu0
  %v304 = vadd.f32 %v84, %v303
  %v305 = vpop.f32.mrf.mxu0
  %v306 = vadd.f32 %v80, %v305
  %v307 = vpop.f32.mrf.mxu0
  %v308 = vadd.f32 %v84, %v307
  %309 = vmatprep.mubr.bf16.mxu0 0
  %310 = vmatmul.mubr.bf16.gmra.mxu0 %v134
  %v311 = vpop.f32.mrf.mxu0
  %v312 = vadd.f32 %v80, %v311
  %v313 = vpop.f32.mrf.mxu0
  %v314 = vadd.f32 %v84, %v313
  %v315 = vpop.f32.mrf.mxu0
  %v316 = vadd.f32 %v80, %v315
  %v317 = vpop.f32.mrf.mxu0
  %v318 = vadd.f32 %v84, %v317
  %319 = vmatprep.mubr.bf16.mxu0 0
  %320 = vmatmul.mubr.bf16.gmra.mxu0 %v137
  %v321 = vpop.f32.mrf.mxu0
  %v322 = vadd.f32 %v80, %v321
  %v323 = vpop.f32.mrf.mxu0
  %v324 = vadd.f32 %v84, %v323
  %v325 = vpop.f32.mrf.mxu0
  %v326 = vadd.f32 %v80, %v325
  %v327 = vpop.f32.mrf.mxu0
  %v328 = vadd.f32 %v84, %v327
  %329 = vmatprep.mubr.bf16.mxu0 0
  %330 = vmatmul.mubr.bf16.gmra.mxu0 %v140
  %v331 = vpop.f32.mrf.mxu0
  %v332 = vadd.f32 %v80, %v331
  %v333 = vpop.f32.mrf.mxu0
  %v334 = vadd.f32 %v84, %v333
  %v335 = vpop.f32.mrf.mxu0
  %v336 = vadd.f32 %v80, %v335
  %v337 = vpop.f32.mrf.mxu0
  %v338 = vadd.f32 %v84, %v337
  %339 = vmatprep.mubr.bf16.mxu0 0
  %340 = vmatmul.mubr.bf16.gmra.mxu0 %v143
  %v341 = vpop.f32.mrf.mxu0
  %v342 = vadd.f32 %v80, %v341
  %v343 = vpop.f32.mrf.mxu0
  %v344 = vadd.f32 %v84, %v343
  %v345 = vpop.f32.mrf.mxu0
  %v346 = vadd.f32 %v80, %v345
  %v347 = vpop.f32.mrf.mxu0
  %v348 = vadd.f32 %v84, %v347
  %349 = vmatprep.mubr.bf16.mxu0 0
  %350 = vmatmul.mubr.bf16.gmra.mxu0 %v146
  %v351 = vpop.f32.mrf.mxu0
  %v352 = vadd.f32 %v80, %v351
  %v353 = vpop.f32.mrf.mxu0
  %v354 = vadd.f32 %v84, %v353
  %v355 = vpop.f32.mrf.mxu0
  %v356 = vadd.f32 %v80, %v355
  %v357 = vpop.f32.mrf.mxu0
  %v358 = vadd.f32 %v84, %v357
  %359 = vmatprep.mubr.bf16.mxu0 0
  %360 = vmatmul.mubr.bf16.gmra.mxu0 %v149
  %v361 = vpop.f32.mrf.mxu0
  %v362 = vadd.f32 %v80, %v361
  %v363 = vpop.f32.mrf.mxu0
  %v364 = vadd.f32 %v84, %v363
  %v365 = vpop.f32.mrf.mxu0
  %v366 = vadd.f32 %v80, %v365
  %v367 = vpop.f32.mrf.mxu0
  %v368 = vadd.f32 %v84, %v367
  %369 = vmatprep.mubr.bf16.mxu0 0
  %370 = vmatmul.mubr.bf16.gmra.mxu0 %v152
  %v371 = vpop.f32.mrf.mxu0
  %v372 = vadd.f32 %v80, %v371
  %v373 = vpop.f32.mrf.mxu0
  %v374 = vadd.f32 %v84, %v373
  %v375 = vpop.f32.mrf.mxu0
  %v376 = vadd.f32 %v80, %v375
  %v377 = vpop.f32.mrf.mxu0
  %v378 = vadd.f32 %v84, %v377
  %379 = vdwg.mxu0
  %v380 = vmax.f32 %v189, 0.0
  %v381 = vmax.f32 %v191, 0.0
  %v382 = vmax.f32 %v302, 0.0
  %v383 = vmax.f32 %v304, 0.0
  %v384 = vmax.f32 %v193, 0.0
  %v385 = vmax.f32 %v195, 0.0
  %v386 = vmax.f32 %v306, 0.0
  %v387 = vmax.f32 %v308, 0.0
  %v388 = vmax.f32 %v199, 0.0
  %v389 = vmax.f32 %v201, 0.0
  %v390 = vmax.f32 %v312, 0.0
  %v391 = vmax.f32 %v314, 0.0
  %v392 = vmax.f32 %v203, 0.0
  %v393 = vmax.f32 %v205, 0.0
  %v394 = vmax.f32 %v316, 0.0
  %v395 = vmax.f32 %v318, 0.0
  %v396 = vmax.f32 %v209, 0.0
  %v397 = vmax.f32 %v211, 0.0
  %v398 = vmax.f32 %v322, 0.0
  %v399 = vmax.f32 %v324, 0.0
  %v400 = vmax.f32 %v213, 0.0
  %v401 = vmax.f32 %v215, 0.0
  %v402 = vmax.f32 %v326, 0.0
  %v403 = vmax.f32 %v328, 0.0
  %v404 = vmax.f32 %v219, 0.0
  %v405 = vmax.f32 %v221, 0.0
  %v406 = vmax.f32 %v332, 0.0
  %v407 = vmax.f32 %v334, 0.0
  %v408 = vmax.f32 %v223, 0.0
  %v409 = vmax.f32 %v225, 0.0
  %v410 = vmax.f32 %v336, 0.0
  %v411 = vmax.f32 %v338, 0.0
  %v412 = vmax.f32 %v229, 0.0
  %v413 = vmax.f32 %v231, 0.0
  %v414 = vmax.f32 %v342, 0.0
  %v415 = vmax.f32 %v344, 0.0
  %v416 = vmax.f32 %v233, 0.0
  %v417 = vmax.f32 %v235, 0.0
  %v418 = vmax.f32 %v346, 0.0
  %v419 = vmax.f32 %v348, 0.0
  %v420 = vmax.f32 %v239, 0.0
  %v421 = vmax.f32 %v241, 0.0
  %v422 = vmax.f32 %v352, 0.0
  %v423 = vmax.f32 %v354, 0.0
  %v424 = vmax.f32 %v243, 0.0
  %v425 = vmax.f32 %v245, 0.0
  %v426 = vmax.f32 %v356, 0.0
  %v427 = vmax.f32 %v358, 0.0
  %v428 = vmax.f32 %v249, 0.0
  %v429 = vmax.f32 %v251, 0.0
  %v430 = vmax.f32 %v362, 0.0
  %v431 = vmax.f32 %v364, 0.0
  %v432 = vmax.f32 %v253, 0.0
  %v433 = vmax.f32 %v255, 0.0
  %v434 = vmax.f32 %v366, 0.0
  %v435 = vmax.f32 %v368, 0.0
  %v436 = vmax.f32 %v259, 0.0
  %v437 = vmax.f32 %v261, 0.0
  %v438 = vmax.f32 %v372, 0.0
  %v439 = vmax.f32 %v374, 0.0
  %v440 = vmax.f32 %v263, 0.0
  %v441 = vmax.f32 %v265, 0.0
  %v442 = vmax.f32 %v376, 0.0
  %v443 = vmax.f32 %v378, 0.0
  %v444 = vpack.c.bf16 %v384, %v380
  %v445 = vpack.c.bf16 %v385, %v381
  %v446 = vpack.c.bf16 %v386, %v382
  %v447 = vpack.c.bf16 %v387, %v383
  %v448 = vpack.c.bf16 %v392, %v388
  %v449 = vpack.c.bf16 %v393, %v389
  %v450 = vpack.c.bf16 %v394, %v390
  %v451 = vpack.c.bf16 %v395, %v391
  %v452 = vpack.c.bf16 %v400, %v396
  %v453 = vpack.c.bf16 %v401, %v397
  %v454 = vpack.c.bf16 %v402, %v398
  %v455 = vpack.c.bf16 %v403, %v399
  %v456 = vpack.c.bf16 %v408, %v404
  %v457 = vpack.c.bf16 %v409, %v405
  %v458 = vpack.c.bf16 %v410, %v406
  %v459 = vpack.c.bf16 %v411, %v407
  %v460 = vpack.c.bf16 %v416, %v412
  %v461 = vpack.c.bf16 %v417, %v413
  %v462 = vpack.c.bf16 %v418, %v414
  %v463 = vpack.c.bf16 %v419, %v415
  %v464 = vpack.c.bf16 %v424, %v420
  %v465 = vpack.c.bf16 %v425, %v421
  %v466 = vpack.c.bf16 %v426, %v422
  %v467 = vpack.c.bf16 %v427, %v423
  %v468 = vpack.c.bf16 %v432, %v428
  %v469 = vpack.c.bf16 %v433, %v429
  %v470 = vpack.c.bf16 %v434, %v430
  %v471 = vpack.c.bf16 %v435, %v431
  %v472 = vpack.c.bf16 %v440, %v436
  %v473 = vpack.c.bf16 %v441, %v437
  %v474 = vpack.c.bf16 %v442, %v438
  %v475 = vpack.c.bf16 %v443, %v439
  %v476 = vld [vmem:[%s3] sm:$0xff]
  %v477 = vld [vmem:[%s3 + $0x8] sm:$0xff]
  %v478 = vld [vmem:[%s3 + $0x10] sm:$0xff]
  %v479 = vld [vmem:[%s3 + $0x18] sm:$0xff]
  %v480 = vld [vmem:[%s3 + $0x20] sm:$0xff]
  %v481 = vld [vmem:[%s3 + $0x28] sm:$0xff]
  %v482 = vld [vmem:[%s3 + $0x30] sm:$0xff]
  %v483 = vld [vmem:[%s3 + $0x38] sm:$0xff]
  %v484 = vld [vmem:[%s3 + $0x40] sm:$0xff]
  %v485 = vld [vmem:[%s3 + $0x48] sm:$0xff]
  %v486 = vld [vmem:[%s3 + $0x50] sm:$0xff]
  %v487 = vld [vmem:[%s3 + $0x58] sm:$0xff]
  %v488 = vld [vmem:[%s3 + $0x60] sm:$0xff]
  %v489 = vld [vmem:[%s3 + $0x68] sm:$0xff]
  %v490 = vld [vmem:[%s3 + $0x70] sm:$0xff]
  %v491 = vld [vmem:[%s3 + $0x78] sm:$0xff]
  %v492 = vld [vmem:[%s3 + $0x80] sm:$0xff]
  %v493 = vld [vmem:[%s3 + $0x88] sm:$0xff]
  %v494 = vld [vmem:[%s3 + $0x90] sm:$0xff]
  %v495 = vld [vmem:[%s3 + $0x98] sm:$0xff]
  %v496 = vld [vmem:[%s3 + $0xa0] sm:$0xff]
  %v497 = vld [vmem:[%s3 + $0xa8] sm:$0xff]
  %v498 = vld [vmem:[%s3 + $0xb0] sm:$0xff]
  %v499 = vld [vmem:[%s3 + $0xb8] sm:$0xff]
  %v500 = vld [vmem:[%s3 + $0xc0] sm:$0xff]
  %v501 = vld [vmem:[%s3 + $0xc8] sm:$0xff]
  %v502 = vld [vmem:[%s3 + $0xd0] sm:$0xff]
  %v503 = vld [vmem:[%s3 + $0xd8] sm:$0xff]
  %v504 = vld [vmem:[%s3 + $0xe0] sm:$0xff]
  %v505 = vld [vmem:[%s3 + $0xe8] sm:$0xff]
  %v506 = vld [vmem:[%s3 + $0xf0] sm:$0xff]
  %v507 = vld [vmem:[%s3 + $0xf8] sm:$0xff]
  %v508 = vld [vmem:[%s3 + $0x100] sm:$0xff]
  %v509 = vld [vmem:[%s3 + $0x108] sm:$0xff]
  %v510 = vld [vmem:[%s3 + $0x110] sm:$0xff]
  %v511 = vld [vmem:[%s3 + $0x118] sm:$0xff]
  %v512 = vld [vmem:[%s3 + $0x120] sm:$0xff]
  %v513 = vld [vmem:[%s3 + $0x128] sm:$0xff]
  %v514 = vld [vmem:[%s3 + $0x130] sm:$0xff]
  %v515 = vld [vmem:[%s3 + $0x138] sm:$0xff]
  %v516 = vld [vmem:[%s3 + $0x140] sm:$0xff]
  %v517 = vld [vmem:[%s3 + $0x148] sm:$0xff]
  %v518 = vld [vmem:[%s3 + $0x150] sm:$0xff]
  %v519 = vld [vmem:[%s3 + $0x158] sm:$0xff]
  %v520 = vld [vmem:[%s3 + $0x160] sm:$0xff]
  %v521 = vld [vmem:[%s3 + $0x168] sm:$0xff]
  %v522 = vld [vmem:[%s3 + $0x170] sm:$0xff]
  %v523 = vld [vmem:[%s3 + $0x178] sm:$0xff]
  %v524 = vld [vmem:[%s3 + $0x180] sm:$0xff]
  %v525 = vld [vmem:[%s3 + $0x188] sm:$0xff]
  %v526 = vld [vmem:[%s3 + $0x190] sm:$0xff]
  %v527 = vld [vmem:[%s3 + $0x198] sm:$0xff]
  %v528 = vld [vmem:[%s3 + $0x1a0] sm:$0xff]
  %v529 = vld [vmem:[%s3 + $0x1a8] sm:$0xff]
  %v530 = vld [vmem:[%s3 + $0x1b0] sm:$0xff]
  %v531 = vld [vmem:[%s3 + $0x1b8] sm:$0xff]
  %v532 = vld [vmem:[%s3 + $0x1c0] sm:$0xff]
  %v533 = vld [vmem:[%s3 + $0x1c8] sm:$0xff]
  %v534 = vld [vmem:[%s3 + $0x1d0] sm:$0xff]
  %v535 = vld [vmem:[%s3 + $0x1d8] sm:$0xff]
  %v536 = vld [vmem:[%s3 + $0x1e0] sm:$0xff]
  %v537 = vld [vmem:[%s3 + $0x1e8] sm:$0xff]
  %v538 = vld [vmem:[%s3 + $0x1f0] sm:$0xff]
  %v539 = vld [vmem:[%s3 + $0x1f8] sm:$0xff]
  %v540 = vld [vmem:[%s4] sm:$0x3]
  %v542 = vlaneseq
  %v543 = vshrl.u32 %v542, 7
  %v544 = vsub.s32 0, %v543
  %v545 = vrot.slane %v540, %v544
  %v546 = vlaneseq
  %v547 = vshrl.u32 %v546, 7
  %v548 = vsub.s32 1, %v547
  %v549 = vrot.slane %v540, %v548
  %v616 = vunpack.c.l.b16 %v476
  %v617 = vunpack.c.h.b16 %v476
  %v618 = vunpack.c.l.b16 %v477
  %v619 = vunpack.c.h.b16 %v477
  %v620 = vunpack.c.l.b16 %v478
  %v621 = vunpack.c.h.b16 %v478
  %v622 = vunpack.c.l.b16 %v479
  %v623 = vunpack.c.h.b16 %v479
  %v624 = vunpack.c.l.b16 %v480
  %v625 = vunpack.c.h.b16 %v480
  %v626 = vunpack.c.l.b16 %v481
  %v627 = vunpack.c.h.b16 %v481
  %v628 = vunpack.c.l.b16 %v482
  %v629 = vunpack.c.h.b16 %v482
  %v630 = vunpack.c.l.b16 %v483
  %v631 = vunpack.c.h.b16 %v483
  %v632 = vunpack.c.l.b16 %v484
  %v633 = vunpack.c.h.b16 %v484
  %v634 = vunpack.c.l.b16 %v485
  %v635 = vunpack.c.h.b16 %v485
  %v636 = vunpack.c.l.b16 %v486
  %v637 = vunpack.c.h.b16 %v486
  %v638 = vunpack.c.l.b16 %v487
  %v639 = vunpack.c.h.b16 %v487
  %v640 = vunpack.c.l.b16 %v488
  %v641 = vunpack.c.h.b16 %v488
  %v642 = vunpack.c.l.b16 %v489
  %v643 = vunpack.c.h.b16 %v489
  %v644 = vunpack.c.l.b16 %v490
  %v645 = vunpack.c.h.b16 %v490
  %v646 = vunpack.c.l.b16 %v491
  %v647 = vunpack.c.h.b16 %v491
  %v648 = vunpack.c.l.b16 %v492
  %v649 = vunpack.c.h.b16 %v492
  %v650 = vunpack.c.l.b16 %v493
  %v651 = vunpack.c.h.b16 %v493
  %v652 = vunpack.c.l.b16 %v494
  %v653 = vunpack.c.h.b16 %v494
  %v654 = vunpack.c.l.b16 %v495
  %v655 = vunpack.c.h.b16 %v495
  %v656 = vunpack.c.l.b16 %v496
  %v657 = vunpack.c.h.b16 %v496
  %v658 = vunpack.c.l.b16 %v497
  %v659 = vunpack.c.h.b16 %v497
  %v660 = vunpack.c.l.b16 %v498
  %v661 = vunpack.c.h.b16 %v498
  %v662 = vunpack.c.l.b16 %v499
  %v663 = vunpack.c.h.b16 %v499
  %v664 = vunpack.c.l.b16 %v500
  %v665 = vunpack.c.h.b16 %v500
  %v666 = vunpack.c.l.b16 %v501
  %v667 = vunpack.c.h.b16 %v501
  %v668 = vunpack.c.l.b16 %v502
  %v669 = vunpack.c.h.b16 %v502
  %v670 = vunpack.c.l.b16 %v503
  %v671 = vunpack.c.h.b16 %v503
  %v672 = vunpack.c.l.b16 %v504
  %v673 = vunpack.c.h.b16 %v504
  %v674 = vunpack.c.l.b16 %v505
  %v675 = vunpack.c.h.b16 %v505
  %v676 = vunpack.c.l.b16 %v506
  %v677 = vunpack.c.h.b16 %v506
  %v678 = vunpack.c.l.b16 %v507
  %v679 = vunpack.c.h.b16 %v507
  %v680 = vunpack.c.l.b16 %v508
  %v681 = vunpack.c.h.b16 %v508
  %v682 = vunpack.c.l.b16 %v509
  %v683 = vunpack.c.h.b16 %v509
  %v684 = vunpack.c.l.b16 %v510
  %v685 = vunpack.c.h.b16 %v510
  %v686 = vunpack.c.l.b16 %v511
  %v687 = vunpack.c.h.b16 %v511
  %v688 = vunpack.c.l.b16 %v512
  %v689 = vunpack.c.h.b16 %v512
  %v690 = vunpack.c.l.b16 %v513
  %v691 = vunpack.c.h.b16 %v513
  %v692 = vunpack.c.l.b16 %v514
  %v693 = vunpack.c.h.b16 %v514
  %v694 = vunpack.c.l.b16 %v515
  %v695 = vunpack.c.h.b16 %v515
  %v696 = vunpack.c.l.b16 %v516
  %v697 = vunpack.c.h.b16 %v516
  %v698 = vunpack.c.l.b16 %v517
  %v699 = vunpack.c.h.b16 %v517
  %v700 = vunpack.c.l.b16 %v518
  %v701 = vunpack.c.h.b16 %v518
  %v702 = vunpack.c.l.b16 %v519
  %v703 = vunpack.c.h.b16 %v519
  %v704 = vunpack.c.l.b16 %v520
  %v705 = vunpack.c.h.b16 %v520
  %v706 = vunpack.c.l.b16 %v521
  %v707 = vunpack.c.h.b16 %v521
  %v708 = vunpack.c.l.b16 %v522
  %v709 = vunpack.c.h.b16 %v522
  %v710 = vunpack.c.l.b16 %v523
  %v711 = vunpack.c.h.b16 %v523
  %v712 = vunpack.c.l.b16 %v524
  %v713 = vunpack.c.h.b16 %v524
  %v714 = vunpack.c.l.b16 %v525
  %v715 = vunpack.c.h.b16 %v525
  %v716 = vunpack.c.l.b16 %v526
  %v717 = vunpack.c.h.b16 %v526
  %v718 = vunpack.c.l.b16 %v527
  %v719 = vunpack.c.h.b16 %v527
  %v720 = vunpack.c.l.b16 %v528
  %v721 = vunpack.c.h.b16 %v528
  %v722 = vunpack.c.l.b16 %v529
  %v723 = vunpack.c.h.b16 %v529
  %v724 = vunpack.c.l.b16 %v530
  %v725 = vunpack.c.h.b16 %v530
  %v726 = vunpack.c.l.b16 %v531
  %v727 = vunpack.c.h.b16 %v531
  %v728 = vunpack.c.l.b16 %v532
  %v729 = vunpack.c.h.b16 %v532
  %v730 = vunpack.c.l.b16 %v533
  %v731 = vunpack.c.h.b16 %v533
  %v732 = vunpack.c.l.b16 %v534
  %v733 = vunpack.c.h.b16 %v534
  %v734 = vunpack.c.l.b16 %v535
  %v735 = vunpack.c.h.b16 %v535
  %v736 = vunpack.c.l.b16 %v536
  %v737 = vunpack.c.h.b16 %v536
  %v738 = vunpack.c.l.b16 %v537
  %v739 = vunpack.c.h.b16 %v537
  %v740 = vunpack.c.l.b16 %v538
  %v741 = vunpack.c.h.b16 %v538
  %v742 = vunpack.c.l.b16 %v539
  %v743 = vunpack.c.h.b16 %v539
  %v744 = vpack.c.b16 %v618, %v616
  %v745 = vpack.c.b16 %v619, %v617
  %v746 = vpack.c.b16 %v622, %v620
  %v747 = vpack.c.b16 %v623, %v621
  %v748 = vpack.c.b16 %v626, %v624
  %v749 = vpack.c.b16 %v627, %v625
  %v750 = vpack.c.b16 %v630, %v628
  %v751 = vpack.c.b16 %v631, %v629
  %v752 = vpack.c.b16 %v634, %v632
  %v753 = vpack.c.b16 %v635, %v633
  %v754 = vpack.c.b16 %v638, %v636
  %v755 = vpack.c.b16 %v639, %v637
  %v756 = vpack.c.b16 %v642, %v640
  %v757 = vpack.c.b16 %v643, %v641
  %v758 = vpack.c.b16 %v646, %v644
  %v759 = vpack.c.b16 %v647, %v645
  %v760 = vpack.c.b16 %v650, %v648
  %v761 = vpack.c.b16 %v651, %v649
  %v762 = vpack.c.b16 %v654, %v652
  %v763 = vpack.c.b16 %v655, %v653
  %v764 = vpack.c.b16 %v658, %v656
  %v765 = vpack.c.b16 %v659, %v657
  %v766 = vpack.c.b16 %v662, %v660
  %v767 = vpack.c.b16 %v663, %v661
  %v768 = vpack.c.b16 %v666, %v664
  %v769 = vpack.c.b16 %v667, %v665
  %v770 = vpack.c.b16 %v670, %v668
  %v771 = vpack.c.b16 %v671, %v669
  %v772 = vpack.c.b16 %v674, %v672
  %v773 = vpack.c.b16 %v675, %v673
  %v774 = vpack.c.b16 %v678, %v676
  %v775 = vpack.c.b16 %v679, %v677
  %v776 = vpack.c.b16 %v682, %v680
  %v777 = vpack.c.b16 %v683, %v681
  %v778 = vpack.c.b16 %v686, %v684
  %v779 = vpack.c.b16 %v687, %v685
  %v780 = vpack.c.b16 %v690, %v688
  %v781 = vpack.c.b16 %v691, %v689
  %v782 = vpack.c.b16 %v694, %v692
  %v783 = vpack.c.b16 %v695, %v693
  %v784 = vpack.c.b16 %v698, %v696
  %v785 = vpack.c.b16 %v699, %v697
  %v786 = vpack.c.b16 %v702, %v700
  %v787 = vpack.c.b16 %v703, %v701
  %v788 = vpack.c.b16 %v706, %v704
  %v789 = vpack.c.b16 %v707, %v705
  %v790 = vpack.c.b16 %v710, %v708
  %v791 = vpack.c.b16 %v711, %v709
  %v792 = vpack.c.b16 %v714, %v712
  %v793 = vpack.c.b16 %v715, %v713
  %v794 = vpack.c.b16 %v718, %v716
  %v795 = vpack.c.b16 %v719, %v717
  %v796 = vpack.c.b16 %v722, %v720
  %v797 = vpack.c.b16 %v723, %v721
  %v798 = vpack.c.b16 %v726, %v724
  %v799 = vpack.c.b16 %v727, %v725
  %v800 = vpack.c.b16 %v730, %v728
  %v801 = vpack.c.b16 %v731, %v729
  %v802 = vpack.c.b16 %v734, %v732
  %v803 = vpack.c.b16 %v735, %v733
  %v804 = vpack.c.b16 %v738, %v736
  %v805 = vpack.c.b16 %v739, %v737
  %v806 = vpack.c.b16 %v742, %v740
  %v807 = vpack.c.b16 %v743, %v741
  %872 = vmatprep.subr.bf16.mxu0 %v759
  %873 = vmatpush1.bf16.msra.mxu0 %v758
  %874 = vmatprep.subr.bf16.mxu0 %v757
  %875 = vmatpush1.bf16.msra.mxu0 %v756
  %876 = vmatprep.subr.bf16.mxu0 %v755
  %877 = vmatpush1.bf16.msra.mxu0 %v754
  %878 = vmatprep.subr.bf16.mxu0 %v753
  %879 = vmatpush1.bf16.msra.mxu0 %v752
  %880 = vmatprep.subr.bf16.mxu0 %v751
  %881 = vmatpush1.bf16.msra.mxu0 %v750
  %882 = vmatprep.subr.bf16.mxu0 %v749
  %883 = vmatpush1.bf16.msra.mxu0 %v748
  %884 = vmatprep.subr.bf16.mxu0 %v747
  %885 = vmatpush1.bf16.msra.mxu0 %v746
  %886 = vmatprep.subr.bf16.mxu0 %v745
  %887 = vmatpush1.bf16.msra.mxu0 %v744
  %888 = vmatprep.subr.bf16.mxu0 %v775
  %889 = vmatpush2.bf16.msra.mxu0 %v774
  %890 = vmatprep.subr.bf16.mxu0 %v773
  %891 = vmatpush2.bf16.msra.mxu0 %v772
  %892 = vmatprep.subr.bf16.mxu0 %v771
  %893 = vmatpush2.bf16.msra.mxu0 %v770
  %894 = vmatprep.subr.bf16.mxu0 %v769
  %895 = vmatpush2.bf16.msra.mxu0 %v768
  %896 = vmatprep.subr.bf16.mxu0 %v767
  %897 = vmatpush2.bf16.msra.mxu0 %v766
  %898 = vmatprep.subr.bf16.mxu0 %v765
  %899 = vmatpush2.bf16.msra.mxu0 %v764
  %900 = vmatprep.subr.bf16.mxu0 %v763
  %901 = vmatpush2.bf16.msra.mxu0 %v762
  %902 = vmatprep.subr.bf16.mxu0 %v761
  %903 = vmatpush2.bf16.msra.mxu0 %v760
  %904 = vmatprep.mubr.bf16.mxu0 %v445
  %905 = vmatmul.mubr.bf16.gmra.mxu0 %v444
  %v906 = vpop.f32.mrf.mxu0
  %v907 = vadd.f32 %v545, %v906
  %v908 = vpop.f32.mrf.mxu0
  %v909 = vadd.f32 %v549, %v908
  %v910 = vpop.f32.mrf.mxu0
  %v911 = vadd.f32 %v545, %v910
  %v912 = vpop.f32.mrf.mxu0
  %v913 = vadd.f32 %v549, %v912
  %914 = vmatprep.mubr.bf16.mxu0 %v449
  %915 = vmatmul.mubr.bf16.gmra.mxu0 %v448
  %v916 = vpop.f32.mrf.mxu0
  %v917 = vadd.f32 %v545, %v916
  %v918 = vpop.f32.mrf.mxu0
  %v919 = vadd.f32 %v549, %v918
  %v920 = vpop.f32.mrf.mxu0
  %v921 = vadd.f32 %v545, %v920
  %v922 = vpop.f32.mrf.mxu0
  %v923 = vadd.f32 %v549, %v922
  %924 = vmatprep.mubr.bf16.mxu0 %v453
  %925 = vmatmul.mubr.bf16.gmra.mxu0 %v452
  %v926 = vpop.f32.mrf.mxu0
  %v927 = vadd.f32 %v545, %v926
  %v928 = vpop.f32.mrf.mxu0
  %v929 = vadd.f32 %v549, %v928
  %v930 = vpop.f32.mrf.mxu0
  %v931 = vadd.f32 %v545, %v930
  %v932 = vpop.f32.mrf.mxu0
  %v933 = vadd.f32 %v549, %v932
  %934 = vmatprep.mubr.bf16.mxu0 %v457
  %935 = vmatmul.mubr.bf16.gmra.mxu0 %v456
  %v936 = vpop.f32.mrf.mxu0
  %v937 = vadd.f32 %v545, %v936
  %v938 = vpop.f32.mrf.mxu0
  %v939 = vadd.f32 %v549, %v938
  %v940 = vpop.f32.mrf.mxu0
  %v941 = vadd.f32 %v545, %v940
  %v942 = vpop.f32.mrf.mxu0
  %v943 = vadd.f32 %v549, %v942
  %944 = vmatprep.mubr.bf16.mxu0 %v461
  %945 = vmatmul.mubr.bf16.gmra.mxu0 %v460
  %v946 = vpop.f32.mrf.mxu0
  %v947 = vadd.f32 %v545, %v946
  %v948 = vpop.f32.mrf.mxu0
  %v949 = vadd.f32 %v549, %v948
  %v950 = vpop.f32.mrf.mxu0
  %v951 = vadd.f32 %v545, %v950
  %v952 = vpop.f32.mrf.mxu0
  %v953 = vadd.f32 %v549, %v952
  %954 = vmatprep.mubr.bf16.mxu0 %v465
  %955 = vmatmul.mubr.bf16.gmra.mxu0 %v464
  %v956 = vpop.f32.mrf.mxu0
  %v957 = vadd.f32 %v545, %v956
  %v958 = vpop.f32.mrf.mxu0
  %v959 = vadd.f32 %v549, %v958
  %v960 = vpop.f32.mrf.mxu0
  %v961 = vadd.f32 %v545, %v960
  %v962 = vpop.f32.mrf.mxu0
  %v963 = vadd.f32 %v549, %v962
  %964 = vmatprep.mubr.bf16.mxu0 %v469
  %965 = vmatmul.mubr.bf16.gmra.mxu0 %v468
  %v966 = vpop.f32.mrf.mxu0
  %v967 = vadd.f32 %v545, %v966
  %v968 = vpop.f32.mrf.mxu0
  %v969 = vadd.f32 %v549, %v968
  %v970 = vpop.f32.mrf.mxu0
  %v971 = vadd.f32 %v545, %v970
  %v972 = vpop.f32.mrf.mxu0
  %v973 = vadd.f32 %v549, %v972
  %974 = vmatprep.mubr.bf16.mxu0 %v473
  %975 = vmatmul.mubr.bf16.gmra.mxu0 %v472
  %v976 = vpop.f32.mrf.mxu0
  %v977 = vadd.f32 %v545, %v976
  %v978 = vpop.f32.mrf.mxu0
  %v979 = vadd.f32 %v549, %v978
  %v980 = vpop.f32.mrf.mxu0
  %v981 = vadd.f32 %v545, %v980
  %v982 = vpop.f32.mrf.mxu0
  %v983 = vadd.f32 %v549, %v982
  %984 = vdwg.mxu0
  %985 = vmatprep.subr.bf16.mxu0 %v791
  %986 = vmatpush1.bf16.msra.mxu0 %v790
  %987 = vmatprep.subr.bf16.mxu0 %v789
  %988 = vmatpush1.bf16.msra.mxu0 %v788
  %989 = vmatprep.subr.bf16.mxu0 %v787
  %990 = vmatpush1.bf16.msra.mxu0 %v786
  %991 = vmatprep.subr.bf16.mxu0 %v785
  %992 = vmatpush1.bf16.msra.mxu0 %v784
  %993 = vmatprep.subr.bf16.mxu0 %v783
  %994 = vmatpush1.bf16.msra.mxu0 %v782
  %995 = vmatprep.subr.bf16.mxu0 %v781
  %996 = vmatpush1.bf16.msra.mxu0 %v780
  %997 = vmatprep.subr.bf16.mxu0 %v779
  %998 = vmatpush1.bf16.msra.mxu0 %v778
  %999 = vmatprep.subr.bf16.mxu0 %v777
  %1000 = vmatpush1.bf16.msra.mxu0 %v776
  %1001 = vmatprep.subr.bf16.mxu0 %v807
  %1002 = vmatpush2.bf16.msra.mxu0 %v806
  %1003 = vmatprep.subr.bf16.mxu0 %v805
  %1004 = vmatpush2.bf16.msra.mxu0 %v804
  %1005 = vmatprep.subr.bf16.mxu0 %v803
  %1006 = vmatpush2.bf16.msra.mxu0 %v802
  %1007 = vmatprep.subr.bf16.mxu0 %v801
  %1008 = vmatpush2.bf16.msra.mxu0 %v800
  %1009 = vmatprep.subr.bf16.mxu0 %v799
  %1010 = vmatpush2.bf16.msra.mxu0 %v798
  %1011 = vmatprep.subr.bf16.mxu0 %v797
  %1012 = vmatpush2.bf16.msra.mxu0 %v796
  %1013 = vmatprep.subr.bf16.mxu0 %v795
  %1014 = vmatpush2.bf16.msra.mxu0 %v794
  %1015 = vmatprep.subr.bf16.mxu0 %v793
  %1016 = vmatpush2.bf16.msra.mxu0 %v792
  %1017 = vmatprep.mubr.bf16.mxu0 %v447
  %1018 = vmatmul.mubr.bf16.gmra.mxu0 %v446
  %v1019 = vpop.f32.mrf.mxu0
  %v1020 = vadd.f32 %v907, %v1019
  %v1021 = vpop.f32.mrf.mxu0
  %v1022 = vadd.f32 %v909, %v1021
  %v1023 = vpop.f32.mrf.mxu0
  %v1024 = vadd.f32 %v911, %v1023
  %v1025 = vpop.f32.mrf.mxu0
  %v1026 = vadd.f32 %v913, %v1025
  %1027 = vmatprep.mubr.bf16.mxu0 %v451
  %1028 = vmatmul.mubr.bf16.gmra.mxu0 %v450
  %v1029 = vpop.f32.mrf.mxu0
  %v1030 = vadd.f32 %v917, %v1029
  %v1031 = vpop.f32.mrf.mxu0
  %v1032 = vadd.f32 %v919, %v1031
  %v1033 = vpop.f32.mrf.mxu0
  %v1034 = vadd.f32 %v921, %v1033
  %v1035 = vpop.f32.mrf.mxu0
  %v1036 = vadd.f32 %v923, %v1035
  %1037 = vmatprep.mubr.bf16.mxu0 %v455
  %1038 = vmatmul.mubr.bf16.gmra.mxu0 %v454
  %v1039 = vpop.f32.mrf.mxu0
  %v1040 = vadd.f32 %v927, %v1039
  %v1041 = vpop.f32.mrf.mxu0
  %v1042 = vadd.f32 %v929, %v1041
  %v1043 = vpop.f32.mrf.mxu0
  %v1044 = vadd.f32 %v931, %v1043
  %v1045 = vpop.f32.mrf.mxu0
  %v1046 = vadd.f32 %v933, %v1045
  %1047 = vmatprep.mubr.bf16.mxu0 %v459
  %1048 = vmatmul.mubr.bf16.gmra.mxu0 %v458
  %v1049 = vpop.f32.mrf.mxu0
  %v1050 = vadd.f32 %v937, %v1049
  %v1051 = vpop.f32.mrf.mxu0
  %v1052 = vadd.f32 %v939, %v1051
  %v1053 = vpop.f32.mrf.mxu0
  %v1054 = vadd.f32 %v941, %v1053
  %v1055 = vpop.f32.mrf.mxu0
  %v1056 = vadd.f32 %v943, %v1055
  %1057 = vmatprep.mubr.bf16.mxu0 %v463
  %1058 = vmatmul.mubr.bf16.gmra.mxu0 %v462
  %v1059 = vpop.f32.mrf.mxu0
  %v1060 = vadd.f32 %v947, %v1059
  %v1061 = vpop.f32.mrf.mxu0
  %v1062 = vadd.f32 %v949, %v1061
  %v1063 = vpop.f32.mrf.mxu0
  %v1064 = vadd.f32 %v951, %v1063
  %v1065 = vpop.f32.mrf.mxu0
  %v1066 = vadd.f32 %v953, %v1065
  %1067 = vmatprep.mubr.bf16.mxu0 %v467
  %1068 = vmatmul.mubr.bf16.gmra.mxu0 %v466
  %v1069 = vpop.f32.mrf.mxu0
  %v1070 = vadd.f32 %v957, %v1069
  %v1071 = vpop.f32.mrf.mxu0
  %v1072 = vadd.f32 %v959, %v1071
  %v1073 = vpop.f32.mrf.mxu0
  %v1074 = vadd.f32 %v961, %v1073
  %v1075 = vpop.f32.mrf.mxu0
  %v1076 = vadd.f32 %v963, %v1075
  %1077 = vmatprep.mubr.bf16.mxu0 %v471
  %1078 = vmatmul.mubr.bf16.gmra.mxu0 %v470
  %v1079 = vpop.f32.mrf.mxu0
  %v1080 = vadd.f32 %v967, %v1079
  %v1081 = vpop.f32.mrf.mxu0
  %v1082 = vadd.f32 %v969, %v1081
  %v1083 = vpop.f32.mrf.mxu0
  %v1084 = vadd.f32 %v971, %v1083
  %v1085 = vpop.f32.mrf.mxu0
  %v1086 = vadd.f32 %v973, %v1085
  %1087 = vmatprep.mubr.bf16.mxu0 %v475
  %1088 = vmatmul.mubr.bf16.gmra.mxu0 %v474
  %v1089 = vpop.f32.mrf.mxu0
  %v1090 = vadd.f32 %v977, %v1089
  %v1091 = vpop.f32.mrf.mxu0
  %v1092 = vadd.f32 %v979, %v1091
  %v1093 = vpop.f32.mrf.mxu0
  %v1094 = vadd.f32 %v981, %v1093
  %v1095 = vpop.f32.mrf.mxu0
  %v1096 = vadd.f32 %v983, %v1095
  %1097 = vdwg.mxu0
  %v1098 = vmax.f32 %v1020, 0.0
  %v1099 = vmax.f32 %v1022, 0.0
  %v1100 = vmax.f32 %v1024, 0.0
  %v1101 = vmax.f32 %v1026, 0.0
  %v1102 = vmax.f32 %v1030, 0.0
  %v1103 = vmax.f32 %v1032, 0.0
  %v1104 = vmax.f32 %v1034, 0.0
  %v1105 = vmax.f32 %v1036, 0.0
  %v1106 = vmax.f32 %v1040, 0.0
  %v1107 = vmax.f32 %v1042, 0.0
  %v1108 = vmax.f32 %v1044, 0.0
  %v1109 = vmax.f32 %v1046, 0.0
  %v1110 = vmax.f32 %v1050, 0.0
  %v1111 = vmax.f32 %v1052, 0.0
  %v1112 = vmax.f32 %v1054, 0.0
  %v1113 = vmax.f32 %v1056, 0.0
  %v1114 = vmax.f32 %v1060, 0.0
  %v1115 = vmax.f32 %v1062, 0.0
  %v1116 = vmax.f32 %v1064, 0.0
  %v1117 = vmax.f32 %v1066, 0.0
  %v1118 = vmax.f32 %v1070, 0.0
  %v1119 = vmax.f32 %v1072, 0.0
  %v1120 = vmax.f32 %v1074, 0.0
  %v1121 = vmax.f32 %v1076, 0.0
  %v1122 = vmax.f32 %v1080, 0.0
  %v1123 = vmax.f32 %v1082, 0.0
  %v1124 = vmax.f32 %v1084, 0.0
  %v1125 = vmax.f32 %v1086, 0.0
  %v1126 = vmax.f32 %v1090, 0.0
  %v1127 = vmax.f32 %v1092, 0.0
  %v1128 = vmax.f32 %v1094, 0.0
  %v1129 = vmax.f32 %v1096, 0.0
  %v1130 = vpack.c.bf16 %v1100, %v1098
  %v1131 = vpack.c.bf16 %v1101, %v1099
  %v1132 = vpack.c.bf16 %v1104, %v1102
  %v1133 = vpack.c.bf16 %v1105, %v1103
  %v1134 = vpack.c.bf16 %v1108, %v1106
  %v1135 = vpack.c.bf16 %v1109, %v1107
  %v1136 = vpack.c.bf16 %v1112, %v1110
  %v1137 = vpack.c.bf16 %v1113, %v1111
  %v1138 = vpack.c.bf16 %v1116, %v1114
  %v1139 = vpack.c.bf16 %v1117, %v1115
  %v1140 = vpack.c.bf16 %v1120, %v1118
  %v1141 = vpack.c.bf16 %v1121, %v1119
  %v1142 = vpack.c.bf16 %v1124, %v1122
  %v1143 = vpack.c.bf16 %v1125, %v1123
  %v1144 = vpack.c.bf16 %v1128, %v1126
  %v1145 = vpack.c.bf16 %v1129, %v1127
  %v1146 = vld [vmem:[%s5] sm:$0xf]
  %v1147 = vld [vmem:[%s5 + $0x4] sm:$0xf]
  %v1148 = vld [vmem:[%s5 + $0x8] sm:$0xf]
  %v1149 = vld [vmem:[%s5 + $0xc] sm:$0xf]
  %v1150 = vld [vmem:[%s5 + $0x10] sm:$0xf]
  %v1151 = vld [vmem:[%s5 + $0x14] sm:$0xf]
  %v1152 = vld [vmem:[%s5 + $0x18] sm:$0xf]
  %v1153 = vld [vmem:[%s5 + $0x1c] sm:$0xf]
  %v1154 = vld [vmem:[%s5 + $0x20] sm:$0xf]
  %v1155 = vld [vmem:[%s5 + $0x24] sm:$0xf]
  %v1156 = vld [vmem:[%s5 + $0x28] sm:$0xf]
  %v1157 = vld [vmem:[%s5 + $0x2c] sm:$0xf]
  %v1158 = vld [vmem:[%s5 + $0x30] sm:$0xf]
  %v1159 = vld [vmem:[%s5 + $0x34] sm:$0xf]
  %v1160 = vld [vmem:[%s5 + $0x38] sm:$0xf]
  %v1161 = vld [vmem:[%s5 + $0x3c] sm:$0xf]
  %v1162 = vld [vmem:[%s5 + $0x40] sm:$0xf]
  %v1163 = vld [vmem:[%s5 + $0x44] sm:$0xf]
  %v1164 = vld [vmem:[%s5 + $0x48] sm:$0xf]
  %v1165 = vld [vmem:[%s5 + $0x4c] sm:$0xf]
  %v1166 = vld [vmem:[%s5 + $0x50] sm:$0xf]
  %v1167 = vld [vmem:[%s5 + $0x54] sm:$0xf]
  %v1168 = vld [vmem:[%s5 + $0x58] sm:$0xf]
  %v1169 = vld [vmem:[%s5 + $0x5c] sm:$0xf]
  %v1170 = vld [vmem:[%s5 + $0x60] sm:$0xf]
  %v1171 = vld [vmem:[%s5 + $0x64] sm:$0xf]
  %v1172 = vld [vmem:[%s5 + $0x68] sm:$0xf]
  %v1173 = vld [vmem:[%s5 + $0x6c] sm:$0xf]
  %v1174 = vld [vmem:[%s5 + $0x70] sm:$0xf]
  %v1175 = vld [vmem:[%s5 + $0x74] sm:$0xf]
  %v1176 = vld [vmem:[%s5 + $0x78] sm:$0xf]
  %v1177 = vld [vmem:[%s5 + $0x7c] sm:$0xf]
  %v1178 = vld [vmem:[%s6] sm:$0x1]
  %v1180 = vlaneseq
  %v1181 = vshrl.u32 %v1180, 7
  %v1182 = vsub.s32 0, %v1181
  %v1183 = vrot.slane %v1178, %v1182
  %v1217 = vunpack.c.l.b16 %v1146
  %v1218 = vunpack.c.l.b16 %v1147
  %v1219 = vunpack.c.l.b16 %v1148
  %v1220 = vunpack.c.l.b16 %v1149
  %v1221 = vunpack.c.l.b16 %v1150
  %v1222 = vunpack.c.l.b16 %v1151
  %v1223 = vunpack.c.l.b16 %v1152
  %v1224 = vunpack.c.l.b16 %v1153
  %v1225 = vunpack.c.l.b16 %v1154
  %v1226 = vunpack.c.l.b16 %v1155
  %v1227 = vunpack.c.l.b16 %v1156
  %v1228 = vunpack.c.l.b16 %v1157
  %v1229 = vunpack.c.l.b16 %v1158
  %v1230 = vunpack.c.l.b16 %v1159
  %v1231 = vunpack.c.l.b16 %v1160
  %v1232 = vunpack.c.l.b16 %v1161
  %v1233 = vunpack.c.l.b16 %v1162
  %v1234 = vunpack.c.l.b16 %v1163
  %v1235 = vunpack.c.l.b16 %v1164
  %v1236 = vunpack.c.l.b16 %v1165
  %v1237 = vunpack.c.l.b16 %v1166
  %v1238 = vunpack.c.l.b16 %v1167
  %v1239 = vunpack.c.l.b16 %v1168
  %v1240 = vunpack.c.l.b16 %v1169
  %v1241 = vunpack.c.l.b16 %v1170
  %v1242 = vunpack.c.l.b16 %v1171
  %v1243 = vunpack.c.l.b16 %v1172
  %v1244 = vunpack.c.l.b16 %v1173
  %v1245 = vunpack.c.l.b16 %v1174
  %v1246 = vunpack.c.l.b16 %v1175
  %v1247 = vunpack.c.l.b16 %v1176
  %v1248 = vunpack.c.l.b16 %v1177
  %v1249 = vpack.c.b16 %v1218, %v1217
  %v1250 = vpack.c.b16 %v1220, %v1219
  %v1251 = vpack.c.b16 %v1222, %v1221
  %v1252 = vpack.c.b16 %v1224, %v1223
  %v1253 = vpack.c.b16 %v1226, %v1225
  %v1254 = vpack.c.b16 %v1228, %v1227
  %v1255 = vpack.c.b16 %v1230, %v1229
  %v1256 = vpack.c.b16 %v1232, %v1231
  %v1257 = vpack.c.b16 %v1234, %v1233
  %v1258 = vpack.c.b16 %v1236, %v1235
  %v1259 = vpack.c.b16 %v1238, %v1237
  %v1260 = vpack.c.b16 %v1240, %v1239
  %v1261 = vpack.c.b16 %v1242, %v1241
  %v1262 = vpack.c.b16 %v1244, %v1243
  %v1263 = vpack.c.b16 %v1246, %v1245
  %v1264 = vpack.c.b16 %v1248, %v1247
  %1281 = vmatprep.subr.bf16.mxu0 0
  %1282 = vmatpush1.bf16.msra.mxu0 %v1256
  %1283 = vmatprep.subr.bf16.mxu0 0
  %1284 = vmatpush1.bf16.msra.mxu0 %v1255
  %1285 = vmatprep.subr.bf16.mxu0 0
  %1286 = vmatpush1.bf16.msra.mxu0 %v1254
  %1287 = vmatprep.subr.bf16.mxu0 0
  %1288 = vmatpush1.bf16.msra.mxu0 %v1253
  %1289 = vmatprep.subr.bf16.mxu0 0
  %1290 = vmatpush1.bf16.msra.mxu0 %v1252
  %1291 = vmatprep.subr.bf16.mxu0 0
  %1292 = vmatpush1.bf16.msra.mxu0 %v1251
  %1293 = vmatprep.subr.bf16.mxu0 0
  %1294 = vmatpush1.bf16.msra.mxu0 %v1250
  %1295 = vmatprep.subr.bf16.mxu0 0
  %1296 = vmatpush1.bf16.msra.mxu0 %v1249
  %1297 = vmatprep.subr.bf16.mxu0 0
  %1298 = vmatpush2.bf16.msra.mxu0 %v1264
  %1299 = vmatprep.subr.bf16.mxu0 0
  %1300 = vmatpush2.bf16.msra.mxu0 %v1263
  %1301 = vmatprep.subr.bf16.mxu0 0
  %1302 = vmatpush2.bf16.msra.mxu0 %v1262
  %1303 = vmatprep.subr.bf16.mxu0 0
  %1304 = vmatpush2.bf16.msra.mxu0 %v1261
  %1305 = vmatprep.subr.bf16.mxu0 0
  %1306 = vmatpush2.bf16.msra.mxu0 %v1260
  %1307 = vmatprep.subr.bf16.mxu0 0
  %1308 = vmatpush2.bf16.msra.mxu0 %v1259
  %1309 = vmatprep.subr.bf16.mxu0 0
  %1310 = vmatpush2.bf16.msra.mxu0 %v1258
  %1311 = vmatprep.subr.bf16.mxu0 0
  %1312 = vmatpush2.bf16.msra.mxu0 %v1257
  %1313 = vmatprep.mubr.bf16.mxu0 %v1131
  %1314 = vmatmul.mubr.bf16.gmra.mxu0 %v1130
  %v1315 = vpop.f32.mrf.mxu0
  %v1316 = vadd.f32 %v1183, %v1315
  %v1317 = vpop.f32.mrf.mxu0
  %v1318 = vpop.f32.mrf.mxu0
  %v1319 = vadd.f32 %v1183, %v1318
  %v1320 = vpop.f32.mrf.mxu0
  %1321 = vmatprep.mubr.bf16.mxu0 %v1133
  %1322 = vmatmul.mubr.bf16.gmra.mxu0 %v1132
  %v1323 = vpop.f32.mrf.mxu0
  %v1324 = vadd.f32 %v1183, %v1323
  %v1325 = vpop.f32.mrf.mxu0
  %v1326 = vpop.f32.mrf.mxu0
  %v1327 = vadd.f32 %v1183, %v1326
  %v1328 = vpop.f32.mrf.mxu0
  %1329 = vmatprep.mubr.bf16.mxu0 %v1135
  %1330 = vmatmul.mubr.bf16.gmra.mxu0 %v1134
  %v1331 = vpop.f32.mrf.mxu0
  %v1332 = vadd.f32 %v1183, %v1331
  %v1333 = vpop.f32.mrf.mxu0
  %v1334 = vpop.f32.mrf.mxu0
  %v1335 = vadd.f32 %v1183, %v1334
  %v1336 = vpop.f32.mrf.mxu0
  %1337 = vmatprep.mubr.bf16.mxu0 %v1137
  %1338 = vmatmul.mubr.bf16.gmra.mxu0 %v1136
  %v1339 = vpop.f32.mrf.mxu0
  %v1340 = vadd.f32 %v1183, %v1339
  %v1341 = vpop.f32.mrf.mxu0
  %v1342 = vpop.f32.mrf.mxu0
  %v1343 = vadd.f32 %v1183, %v1342
  %v1344 = vpop.f32.mrf.mxu0
  %1345 = vmatprep.mubr.bf16.mxu0 %v1139
  %1346 = vmatmul.mubr.bf16.gmra.mxu0 %v1138
  %v1347 = vpop.f32.mrf.mxu0
  %v1348 = vadd.f32 %v1183, %v1347
  %v1349 = vpop.f32.mrf.mxu0
  %v1350 = vpop.f32.mrf.mxu0
  %v1351 = vadd.f32 %v1183, %v1350
  %v1352 = vpop.f32.mrf.mxu0
  %1353 = vmatprep.mubr.bf16.mxu0 %v1141
  %1354 = vmatmul.mubr.bf16.gmra.mxu0 %v1140
  %v1355 = vpop.f32.mrf.mxu0
  %v1356 = vadd.f32 %v1183, %v1355
  %v1357 = vpop.f32.mrf.mxu0
  %v1358 = vpop.f32.mrf.mxu0
  %v1359 = vadd.f32 %v1183, %v1358
  %v1360 = vpop.f32.mrf.mxu0
  %1361 = vmatprep.mubr.bf16.mxu0 %v1143
  %1362 = vmatmul.mubr.bf16.gmra.mxu0 %v1142
  %v1363 = vpop.f32.mrf.mxu0
  %v1364 = vadd.f32 %v1183, %v1363
  %v1365 = vpop.f32.mrf.mxu0
  %v1366 = vpop.f32.mrf.mxu0
  %v1367 = vadd.f32 %v1183, %v1366
  %v1368 = vpop.f32.mrf.mxu0
  %1369 = vmatprep.mubr.bf16.mxu0 %v1145
  %1370 = vmatmul.mubr.bf16.gmra.mxu0 %v1144
  %v1371 = vpop.f32.mrf.mxu0
  %v1372 = vadd.f32 %v1183, %v1371
  %v1373 = vpop.f32.mrf.mxu0
  %v1374 = vpop.f32.mrf.mxu0
  %v1375 = vadd.f32 %v1183, %v1374
  %v1376 = vpop.f32.mrf.mxu0
  %1377 = vdwg.mxu0
  %v1378 = vmax.f32 %v1316, 0.0
  %v1379 = vmax.f32 %v1319, 0.0
  %v1380 = vmax.f32 %v1324, 0.0
  %v1381 = vmax.f32 %v1327, 0.0
  %v1382 = vmax.f32 %v1332, 0.0
  %v1383 = vmax.f32 %v1335, 0.0
  %v1384 = vmax.f32 %v1340, 0.0
  %v1385 = vmax.f32 %v1343, 0.0
  %v1386 = vmax.f32 %v1348, 0.0
  %v1387 = vmax.f32 %v1351, 0.0
  %v1388 = vmax.f32 %v1356, 0.0
  %v1389 = vmax.f32 %v1359, 0.0
  %v1390 = vmax.f32 %v1364, 0.0
  %v1391 = vmax.f32 %v1367, 0.0
  %v1392 = vmax.f32 %v1372, 0.0
  %v1393 = vmax.f32 %v1375, 0.0
  %v1394 = vpack.c.bf16 %v1379, %v1378
  %v1395 = vpack.c.bf16 %v1381, %v1380
  %v1396 = vpack.c.bf16 %v1383, %v1382
  %v1397 = vpack.c.bf16 %v1385, %v1384
  %v1398 = vpack.c.bf16 %v1387, %v1386
  %v1399 = vpack.c.bf16 %v1389, %v1388
  %v1400 = vpack.c.bf16 %v1391, %v1390
  %v1401 = vpack.c.bf16 %v1393, %v1392
  %v1402 = vld [vmem:[%s7] sm:$0x1]
  %v1403 = vld [vmem:[#allocation2] sm:$0x1]
  %1405 = vset.pattern.permute.xlu0 0
  %1406 = vperm.xlu0 %1405, %v1403
  %v1407 = vpop.permute.xlu0 %1406
  %v1409 = vlaneseq
  %v1410 = vshrl.u32 %v1409, 7
  %v1411 = vsub.s32 0, %v1410
  %v1412 = vrot.slane %v1407, %v1411
  %1413 = vmatprep.subr.bf16.mxu0 0
  %1414 = vmatpush1.bf16.xpose.msra.mxu0 %v1401
  %1415 = vmatprep.subr.bf16.mxu0 0
  %1416 = vmatpush1.bf16.xpose.msra.mxu0 %v1400
  %1417 = vmatprep.subr.bf16.mxu0 0
  %1418 = vmatpush1.bf16.xpose.msra.mxu0 %v1399
  %1419 = vmatprep.subr.bf16.mxu0 0
  %1420 = vmatpush1.bf16.xpose.msra.mxu0 %v1398
  %1421 = vmatprep.subr.bf16.mxu0 0
  %1422 = vmatpush1.bf16.xpose.msra.mxu0 %v1397
  %1423 = vmatprep.subr.bf16.mxu0 0
  %1424 = vmatpush1.bf16.xpose.msra.mxu0 %v1396
  %1425 = vmatprep.subr.bf16.mxu0 0
  %1426 = vmatpush1.bf16.xpose.msra.mxu0 %v1395
  %1427 = vmatprep.subr.bf16.mxu0 0
  %1428 = vmatpush1.bf16.xpose.msra.mxu0 %v1394
  %1429 = vmatprep.subr.bf16.mxu0 0
  %1430 = vmatpush2.bf16.xpose.msra.mxu0 0
  %1431 = vmatprep.subr.bf16.mxu0 0
  %1432 = vmatpush2.bf16.xpose.msra.mxu0 0
  %1433 = vmatprep.subr.bf16.mxu0 0
  %1434 = vmatpush2.bf16.xpose.msra.mxu0 0
  %1435 = vmatprep.subr.bf16.mxu0 0
  %1436 = vmatpush2.bf16.xpose.msra.mxu0 0
  %1437 = vmatprep.subr.bf16.mxu0 0
  %1438 = vmatpush2.bf16.xpose.msra.mxu0 0
  %1439 = vmatprep.subr.bf16.mxu0 0
  %1440 = vmatpush2.bf16.xpose.msra.mxu0 0
  %1441 = vmatprep.subr.bf16.mxu0 0
  %1442 = vmatpush2.bf16.xpose.msra.mxu0 0
  %1443 = vmatprep.subr.bf16.mxu0 0
  %1444 = vmatpush2.bf16.xpose.msra.mxu0 0
  %1445 = vmatprep.mubr.bf16.mxu0 0
  %1446 = vmatmul.mubr.bf16.gmra.mxu0 %v1402
  %v1447 = vpop.f32.mrf.mxu0
  %v1448 = vadd.f32 %v1412, %v1447
  %v1449 = vpop.f32.mrf.mxu0
  %v1450 = vpop.f32.mrf.mxu0
  %v1451 = vpop.f32.mrf.mxu0
  %1452 = vdwg.mxu0
  %v1453 = vxor.u32 %v1448, 2147483648
  %v1454 = vmul.f32 %v1453, 1.442695
  %v1455 = vpow.pop %v1454
  %v1456 = vadd.f32 %v1455, 1.0
  %v1457 = vrcp.pop %v1456
  %v1458 = vmul.f32 1.0, %v1457
  %1459 = vst [vmem:[%s9] sm:$0x1] %v1458
  // Predicated region
  $region38: #{dnn_forward.1} parent=0 // pred_check
    _
  $region39: #{dnn_forward.1} parent=0 // pred_check_branch
    %1461 = sbr.rel (0) target = $region41
  $region40: #{dnn_forward.1} parent=0 // pred_region
    _
  $region41: #{dnn_forward.1} parent=0 // pred_fallthru
    _
  // Predicated region
  $region42: #{dnn_forward.1} parent=0 // pred_check
    _
  $region43: #{dnn_forward.1} parent=0 // pred_check_branch
    %1463 = sbr.rel (0) target = $region45
  $region44: #{dnn_forward.1} parent=0 // pred_region
    _
  $region45: #{dnn_forward.1} parent=0 // pred_fallthru
    _

</llo_original>
